<compile_context>
chip_gen: v6e
topology: v6e:2x2x1
jax: 0.10.0
libtpu: 0.0.40
codegen_flags: <defaults>
</compile_context>

<pallas_src>
import functools

import jax
import jax.numpy as jnp
from jax.experimental import pallas as pl
from jax.experimental.pallas import tpu as pltpu


def _ls_ce_kernel(tgt_ref, x_ref, loss_ref, m_sc, se_sc, sx_sc, st_sc, *,
                  smoothing, ignore_index, n_rows, vocab, block_n, block_v,
                  mask_cols):
    """Grid step (i, j): rows block i, vocab block j (online logsumexp).

    tgt_ref:  (block_n, 1) int32 targets
    x_ref:    (block_n, block_v) logits in their HBM storage dtype (e.g. bf16)
    loss_ref: (block_n, 1) float32 output (written on the last vocab step)
    m_sc/se_sc/sx_sc/st_sc: (block_n, 1) fp32 running max / sum(exp) / sum(x) /
                            x[target] accumulators.
    """
    i = pl.program_id(0)          # row-block index ("parallel")
    j = pl.program_id(1)          # vocab-block index ("arbitrary", innermost)

    @pl.when(j == 0)
    def _():
        m_sc[...] = jnp.full(m_sc.shape, -jnp.inf, m_sc.dtype)
        se_sc[...] = jnp.zeros(se_sc.shape, se_sc.dtype)
        sx_sc[...] = jnp.zeros(sx_sc.shape, sx_sc.dtype)
        st_sc[...] = jnp.zeros(st_sc.shape, st_sc.dtype)

    x = x_ref[...]                                  # (bn, bv) storage dtype
    tgt = tgt_ref[...]                              # (bn, 1) int32

    # Global column index of each lane in this vocab block.
    col = j * block_v + jax.lax.broadcasted_iota(jnp.int32, x.shape, 1)
    onehot = col == tgt                             # (bn, 1) broadcasts

    if mask_cols:
        # Partial last vocab block: lanes with col >= vocab hold garbage.
        col_ok = col < vocab
        x_max_in = jnp.where(col_ok, x, jnp.asarray(-jnp.inf, x.dtype))
        x_sum_in = jnp.where(col_ok, x, jnp.zeros_like(x))
    else:
        col_ok = None
        x_max_in = x
        x_sum_in = x

    # Online logsumexp update with fp32 accumulators; max / sums stay in the
    # storage dtype (bf16 packed on v6e/v7x), only the exp chain is upcast.
    m_blk = jnp.max(x_max_in, axis=-1, keepdims=True).astype(jnp.float32)
    m_prev = m_sc[...]
    m_new = jnp.maximum(m_prev, m_blk)
    alpha = jnp.exp(m_prev - m_new)                 # first block: exp(-inf) = 0

    e = jnp.exp(x.astype(jnp.float32) - m_new)      # sole consumer of "shifted"
    if mask_cols:
        e = jnp.where(col_ok, e, 0.0)

    se_sc[...] = alpha * se_sc[...] + jnp.sum(e, axis=-1, keepdims=True)
    sx_sc[...] = sx_sc[...] + jnp.sum(
        x_sum_in, axis=-1, keepdims=True, dtype=jnp.float32)
    st_sc[...] = st_sc[...] + jnp.sum(
        jnp.where(onehot, x, jnp.zeros_like(x)),
        axis=-1, keepdims=True, dtype=jnp.float32)
    m_sc[...] = m_new

    @pl.when(j == pl.num_programs(1) - 1)
    def _():
        lse = jnp.log(se_sc[...]) + m_sc[...]                  # (bn, 1) fp32
        nll_loss = lse - st_sc[...]
        smooth_loss = lse - sx_sc[...] * (1.0 / vocab)
        loss = (1.0 - smoothing) * nll_loss + smoothing * smooth_loss
        # ignore_index mask + ragged-tail row mask (OOB rows hold garbage).
        row = i * block_n + jax.lax.broadcasted_iota(jnp.int32, loss.shape, 0)
        masked = (tgt == ignore_index) | (row >= n_rows)
        loss_ref[...] = jnp.where(masked, 0.0, loss).astype(loss_ref.dtype)


def _vmem_capacity_bytes():
    """Per-core VMEM capacity (generation-aware); conservative fallback."""
    try:
        cap = getattr(pltpu.get_tpu_info(), "vmem_capacity_bytes", None)
        if cap:
            return int(cap)
    except Exception:
        pass
    return 64 * 1024 * 1024  # v7x-sized fallback, safe on all generations


def _row_align(in_itemsize):
    # Sub-32-bit dtypes pack rows along sublanes: 8 f32 / 16 bf16 / 32 int8.
    return max(8, 32 // int(in_itemsize))


def _choose_blocks(n_rows, vocab, in_itemsize, budget_bytes):
    """Pick (block_n, block_v) so double-buffered x tiles + fp32 intermediates
    fit the budget, preferring full-vocab blocks, while keeping enough grid
    steps to hide DMAs and shard rows across TensorCores."""
    align = _row_align(in_itemsize)
    # 2x double-buffered input tile + ~5 fp32-wide (bn, bv) temps (exp chain,
    # int32 iota, masks/selects, slack) -- the old 3x estimate undercounted.
    bytes_per_elem = 2 * in_itemsize + 20

    n_aligned = ((n_rows + align - 1) // align) * align
    rows_full_v = budget_bytes // (vocab * bytes_per_elem)

    if rows_full_v >= min(256, n_aligned):
        block_v = vocab                          # single-pass logsumexp
    else:
        # Vocab-axis split (online logsumexp) so row tiles stay 256+ even for
        # 128k-256k vocabularies on v7x's 64 MiB VMEM.
        target_bn = max(align, min(256, n_aligned))
        bv = budget_bytes // (target_bn * bytes_per_elem)
        block_v = min(vocab, max(128, (bv // 128) * 128))

    block_n = budget_bytes // (block_v * bytes_per_elem)
    block_n = max(align, (block_n // align) * align)
    block_n = min(block_n, 512, n_aligned)

    # Keep >= ~8 total pipeline steps (>= 2 row steps for megacore) when N allows.
    n_vblocks = -(-vocab // block_v)
    for steps in (max(2, -(-8 // n_vblocks)), 2):
        if n_rows >= steps * align:
            block_n = min(block_n, max(align, (n_rows // steps // align) * align))
            break
    return block_n, block_v


def label_smoothing_cross_entropy(x, target, ignore_index, smoothing, *,
                                  block_n=None, block_v=None):
    """x: (N, V) float logits (any dtype, NOT pre-cast), target: (N,) int.
    Returns (N,) float32 per-token loss."""
    N, V = x.shape
    itemsize = jnp.dtype(x.dtype).itemsize
    align = _row_align(itemsize)

    cap = _vmem_capacity_bytes()
    budget = (cap * 3) // 5          # ~0.6x physical VMEM for the working set
    vmem_limit = (cap * 3) // 4      # ~0.75x physical VMEM scoped limit

    auto_bn, auto_bv = _choose_blocks(N, V, itemsize, budget)
    block_n = auto_bn if block_n is None else int(block_n)
    block_v = auto_bv if block_v is None else int(block_v)
    block_n = max(align, (block_n // align) * align)
    if block_v >= V:
        block_v = V                               # full-dim block (lane-pad masked by Mosaic)
    else:
        block_v = max(128, (block_v // 128) * 128)

    grid = (pl.cdiv(N, block_n), pl.cdiv(V, block_v))
    mask_cols = (V % block_v) != 0   # partial last vocab block needs lane masking

    tgt2d = target.astype(jnp.int32).reshape(N, 1)

    kernel = functools.partial(
        _ls_ce_kernel,
        smoothing=float(smoothing),
        ignore_index=int(ignore_index),
        n_rows=int(N),
        vocab=int(V),
        block_n=int(block_n),
        block_v=int(block_v),
        mask_cols=bool(mask_cols),
    )

    out = pl.pallas_call(
        kernel,
        out_shape=jax.ShapeDtypeStruct((N, 1), jnp.float32),
        grid=grid,
        in_specs=[
            pl.BlockSpec((block_n, 1), lambda i, j: (i, 0)),        # targets
            pl.BlockSpec((block_n, block_v), lambda i, j: (i, j)),  # logits (orig dtype)
        ],
        out_specs=pl.BlockSpec((block_n, 1), lambda i, j: (i, 0)),
        scratch_shapes=[pltpu.VMEM((block_n, 1), jnp.float32) for _ in range(4)],
        compiler_params=pltpu.CompilerParams(
            dimension_semantics=("parallel", "arbitrary"),
            vmem_limit_bytes=int(vmem_limit),
        ),
    )(tgt2d, x)

    return out[:, 0]


def _reference(x, target, ignore_index, smoothing):
    logprobs = jax.nn.log_softmax(x.astype(jnp.float32), axis=-1)
    nll = -jnp.take_along_axis(logprobs, target[:, None], axis=-1)[:, 0]
    smooth = -jnp.mean(logprobs, axis=-1)
    loss = (1.0 - smoothing) * nll + smoothing * smooth
    return jnp.where(target == ignore_index, 0.0, loss)


if __name__ == "__main__":
    key = jax.random.PRNGKey(0)
    kx, kt = jax.random.split(key)
    smoothing = 0.1
    ignore_index = 0  # e.g. pad token id

    # N = batch_size * sequence_length = 2 * 8 = 16, vocab_size = 32
    N, V = 16, 32
    x = jax.random.normal(kx, (N, V), dtype=jnp.float32)
    target = jax.random.randint(kt, (N,), 0, V, dtype=jnp.int32)

    # 1) fp32, auto tiling (single vocab block)
    loss = jax.block_until_ready(
        label_smoothing_cross_entropy(x, target, ignore_index, smoothing))
    ref = _reference(x, target, ignore_index, smoothing)
    assert loss.shape == (N,)
    assert jnp.allclose(loss, ref, atol=1e-5, rtol=1e-5), (loss, ref)

    # 2) bf16-in-HBM path (real-model dtype; upcast only inside the exp chain)
    x_bf16 = x.astype(jnp.bfloat16)
    loss_bf = jax.block_until_ready(
        label_smoothing_cross_entropy(x_bf16, target, ignore_index, smoothing))
    ref_bf = _reference(x_bf16.astype(jnp.float32), target, ignore_index, smoothing)
    assert jnp.allclose(loss_bf, ref_bf, atol=1e-3, rtol=1e-3), (loss_bf, ref_bf)

    # 3) ragged rows (N % block_n != 0) + multi-step vocab axis (online
    #    logsumexp), forced to tiny tiles so those paths run at small shapes.
    k2x, k2t = jax.random.split(jax.random.PRNGKey(1))
    N2, V2 = 20, 384
    x2 = jax.random.normal(k2x, (N2, V2), dtype=jnp.float32)
    t2 = jax.random.randint(k2t, (N2,), 0, V2, dtype=jnp.int32)
    loss2 = jax.block_until_ready(
        label_smoothing_cross_entropy(x2, t2, ignore_index, smoothing,
                                      block_n=8, block_v=128))
    ref2 = _reference(x2, t2, ignore_index, smoothing)
    assert loss2.shape == (N2,)
    assert jnp.allclose(loss2, ref2, atol=1e-4, rtol=1e-5), (loss2, ref2)

    # 4) partial last vocab block (V % block_v != 0) -> in-kernel lane masking
    k3x, k3t = jax.random.split(jax.random.PRNGKey(2))
    N3, V3 = 16, 300
    x3 = jax.random.normal(k3x, (N3, V3), dtype=jnp.float32)
    t3 = jax.random.randint(k3t, (N3,), 0, V3, dtype=jnp.int32)
    loss3 = jax.block_until_ready(
        label_smoothing_cross_entropy(x3, t3, ignore_index, smoothing,
                                      block_n=8, block_v=128))
    ref3 = _reference(x3, t3, ignore_index, smoothing)
    assert jnp.allclose(loss3, ref3, atol=1e-4, rtol=1e-5), (loss3, ref3)

    print("KERNEL_OK")
</pallas_src>

<mosaic_0001>
module attributes {stable_mosaic.version = 11 : i64} {
  func.func @_ls_ce_kernel(%arg0: i32, %arg1: i32, %arg2: memref<8x1xi32, #tpu.memory_space<vmem>>, %arg3: memref<8x32xf32, #tpu.memory_space<vmem>>, %arg4: memref<8x1xf32, #tpu.memory_space<vmem>>, %arg5: memref<8x1xf32, #tpu.memory_space<vmem>>, %arg6: memref<8x1xf32, #tpu.memory_space<vmem>>, %arg7: memref<8x1xf32, #tpu.memory_space<vmem>>, %arg8: memref<8x1xf32, #tpu.memory_space<vmem>>) attributes {dimension_semantics = [#tpu.dimension_semantics<parallel>, #tpu.dimension_semantics<arbitrary>], iteration_bounds = array<i64: 2, 1>, scalar_prefetch = 0 : i64, scratch_operands = 4 : i64, tpu.core_type = #tpu.core_type<tc>, window_params = [{transform_indices = @transform_0, window_bounds = array<i64: 8, 1>}, {transform_indices = @transform_1, window_bounds = array<i64: 8, 32>}, {transform_indices = @transform_2, window_bounds = array<i64: 8, 1>}]} {
    %c0_i32 = arith.constant 0 : i32
    %0 = arith.cmpi eq, %arg1, %c0_i32 : i32
    %1 = arith.extui %0 : i1 to i32
    %c0_i32_0 = arith.constant 0 : i32
    %2 = arith.cmpi ne, %1, %c0_i32_0 : i32
    scf.if %2 {
      %cst_26 = arith.constant 0xFF800000 : f32
      %42 = vector.broadcast %cst_26 : f32 to vector<8x1xf32>
      %c0_27 = arith.constant 0 : index
      %c0_28 = arith.constant 0 : index
      %43 = vector.load %arg5[%c0_27, %c0_28] : memref<8x1xf32, #tpu.memory_space<vmem>>, vector<8x1xf32>
      tpu.vector_store %arg5[%c0_27, %c0_28], %42 {strides = array<i32>} : memref<8x1xf32, #tpu.memory_space<vmem>>, vector<8x1xf32>,
      %cst_29 = arith.constant 0.000000e+00 : f32
      %44 = vector.broadcast %cst_29 : f32 to vector<8x1xf32>
      %c0_30 = arith.constant 0 : index
      %c0_31 = arith.constant 0 : index
      %45 = vector.load %arg6[%c0_30, %c0_31] : memref<8x1xf32, #tpu.memory_space<vmem>>, vector<8x1xf32>
      tpu.vector_store %arg6[%c0_30, %c0_31], %44 {strides = array<i32>} : memref<8x1xf32, #tpu.memory_space<vmem>>, vector<8x1xf32>,
      %cst_32 = arith.constant 0.000000e+00 : f32
      %46 = vector.broadcast %cst_32 : f32 to vector<8x1xf32>
      %c0_33 = arith.constant 0 : index
      %c0_34 = arith.constant 0 : index
      %47 = vector.load %arg7[%c0_33, %c0_34] : memref<8x1xf32, #tpu.memory_space<vmem>>, vector<8x1xf32>
      tpu.vector_store %arg7[%c0_33, %c0_34], %46 {strides = array<i32>} : memref<8x1xf32, #tpu.memory_space<vmem>>, vector<8x1xf32>,
      %cst_35 = arith.constant 0.000000e+00 : f32
      %48 = vector.broadcast %cst_35 : f32 to vector<8x1xf32>
      %c0_36 = arith.constant 0 : index
      %c0_37 = arith.constant 0 : index
      %49 = vector.load %arg8[%c0_36, %c0_37] : memref<8x1xf32, #tpu.memory_space<vmem>>, vector<8x1xf32>
      tpu.vector_store %arg8[%c0_36, %c0_37], %48 {strides = array<i32>} : memref<8x1xf32, #tpu.memory_space<vmem>>, vector<8x1xf32>,
    } else {
    }
    %c0 = arith.constant 0 : index
    %c0_1 = arith.constant 0 : index
    %3 = vector.load %arg3[%c0, %c0_1] : memref<8x32xf32, #tpu.memory_space<vmem>>, vector<8x32xf32>
    %c0_2 = arith.constant 0 : index
    %c0_3 = arith.constant 0 : index
    %4 = vector.load %arg2[%c0_2, %c0_3] : memref<8x1xi32, #tpu.memory_space<vmem>>, vector<8x1xi32>
    %c32_i32 = arith.constant 32 : i32
    %5 = arith.muli %arg1, %c32_i32 : i32
    %6 = tpu.iota {dimensions = array<i32: 1>} : vector<8x32xi32>
    %7 = vector.broadcast %5 : i32 to vector<8x32xi32>
    %8 = arith.addi %7, %6 : vector<8x32xi32>
    %9 = vector.broadcast %4 : vector<8x1xi32> to vector<8x32xi32>
    %10 = arith.cmpi eq, %8, %9 : vector<8x32xi32>
    %cst = arith.constant dense<0xFF800000> : vector<8xf32>
    %11 = vector.multi_reduction <maximumf>, %3, %cst [1] : vector<8x32xf32> to vector<8xf32>
    %12 = vector.shape_cast %11 : vector<8xf32> to vector<8x1xf32>
    %c0_4 = arith.constant 0 : index
    %c0_5 = arith.constant 0 : index
    %13 = vector.load %arg5[%c0_4, %c0_5] : memref<8x1xf32, #tpu.memory_space<vmem>>, vector<8x1xf32>
    %14 = arith.maximumf %13, %12 : vector<8x1xf32>
    %15 = arith.subf %13, %14 : vector<8x1xf32>
    %16 = math.exp %15 : vector<8x1xf32>
    %17 = vector.broadcast %14 : vector<8x1xf32> to vector<8x32xf32>
    %18 = arith.subf %3, %17 : vector<8x32xf32>
    %19 = math.exp %18 : vector<8x32xf32>
    %c0_6 = arith.constant 0 : index
    %c0_7 = arith.constant 0 : index
    %20 = vector.load %arg6[%c0_6, %c0_7] : memref<8x1xf32, #tpu.memory_space<vmem>>, vector<8x1xf32>
    %21 = arith.mulf %16, %20 : vector<8x1xf32>
    %cst_8 = arith.constant dense<0.000000e+00> : vector<8xf32>
    %22 = vector.multi_reduction <add>, %19, %cst_8 [1] : vector<8x32xf32> to vector<8xf32>
    %23 = vector.shape_cast %22 : vector<8xf32> to vector<8x1xf32>
    %24 = arith.addf %21, %23 : vector<8x1xf32>
    %c0_9 = arith.constant 0 : index
    %c0_10 = arith.constant 0 : index
    %25 = vector.load %arg6[%c0_9, %c0_10] : memref<8x1xf32, #tpu.memory_space<vmem>>, vector<8x1xf32>
    tpu.vector_store %arg6[%c0_9, %c0_10], %24 {strides = array<i32>} : memref<8x1xf32, #tpu.memory_space<vmem>>, vector<8x1xf32>,
    %c0_11 = arith.constant 0 : index
    %c0_12 = arith.constant 0 : index
    %26 = vector.load %arg7[%c0_11, %c0_12] : memref<8x1xf32, #tpu.memory_space<vmem>>, vector<8x1xf32>
    %cst_13 = arith.constant dense<0.000000e+00> : vector<8xf32>
    %27 = vector.multi_reduction <add>, %3, %cst_13 [1] : vector<8x32xf32> to vector<8xf32>
    %28 = vector.shape_cast %27 : vector<8xf32> to vector<8x1xf32>
    %29 = arith.addf %26, %28 : vector<8x1xf32>
    %c0_14 = arith.constant 0 : index
    %c0_15 = arith.constant 0 : index
    %30 = vector.load %arg7[%c0_14, %c0_15] : memref<8x1xf32, #tpu.memory_space<vmem>>, vector<8x1xf32>
    tpu.vector_store %arg7[%c0_14, %c0_15], %29 {strides = array<i32>} : memref<8x1xf32, #tpu.memory_space<vmem>>, vector<8x1xf32>,
    %c0_16 = arith.constant 0 : index
    %c0_17 = arith.constant 0 : index
    %31 = vector.load %arg8[%c0_16, %c0_17] : memref<8x1xf32, #tpu.memory_space<vmem>>, vector<8x1xf32>
    %cst_18 = arith.constant 0.000000e+00 : f32
    %32 = vector.broadcast %cst_18 : f32 to vector<8x32xf32>
    %33 = arith.select %10, %3, %32 : vector<8x32xi1>, vector<8x32xf32>
    %cst_19 = arith.constant dense<0.000000e+00> : vector<8xf32>
    %34 = vector.multi_reduction <add>, %33, %cst_19 [1] : vector<8x32xf32> to vector<8xf32>
    %35 = vector.shape_cast %34 : vector<8xf32> to vector<8x1xf32>
    %36 = arith.addf %31, %35 : vector<8x1xf32>
    %c0_20 = arith.constant 0 : index
    %c0_21 = arith.constant 0 : index
    %37 = vector.load %arg8[%c0_20, %c0_21] : memref<8x1xf32, #tpu.memory_space<vmem>>, vector<8x1xf32>
    tpu.vector_store %arg8[%c0_20, %c0_21], %36 {strides = array<i32>} : memref<8x1xf32, #tpu.memory_space<vmem>>, vector<8x1xf32>,
    %c0_22 = arith.constant 0 : index
    %c0_23 = arith.constant 0 : index
    %38 = vector.load %arg5[%c0_22, %c0_23] : memref<8x1xf32, #tpu.memory_space<vmem>>, vector<8x1xf32>
    tpu.vector_store %arg5[%c0_22, %c0_23], %14 {strides = array<i32>} : memref<8x1xf32, #tpu.memory_space<vmem>>, vector<8x1xf32>,
    %c0_i32_24 = arith.constant 0 : i32
    %39 = arith.cmpi eq, %arg1, %c0_i32_24 : i32
    %40 = arith.extui %39 : i1 to i32
    %c0_i32_25 = arith.constant 0 : i32
    %41 = arith.cmpi ne, %40, %c0_i32_25 : i32
    scf.if %41 {
      %c0_26 = arith.constant 0 : index
      %c0_27 = arith.constant 0 : index
      %42 = vector.load %arg6[%c0_26, %c0_27] : memref<8x1xf32, #tpu.memory_space<vmem>>, vector<8x1xf32>
      %43 = math.log %42 : vector<8x1xf32>
      %c0_28 = arith.constant 0 : index
      %c0_29 = arith.constant 0 : index
      %44 = vector.load %arg5[%c0_28, %c0_29] : memref<8x1xf32, #tpu.memory_space<vmem>>, vector<8x1xf32>
      %45 = arith.addf %43, %44 : vector<8x1xf32>
      %c0_30 = arith.constant 0 : index
      %c0_31 = arith.constant 0 : index
      %46 = vector.load %arg8[%c0_30, %c0_31] : memref<8x1xf32, #tpu.memory_space<vmem>>, vector<8x1xf32>
      %47 = arith.subf %45, %46 : vector<8x1xf32>
      %c0_32 = arith.constant 0 : index
      %c0_33 = arith.constant 0 : index
      %48 = vector.load %arg7[%c0_32, %c0_33] : memref<8x1xf32, #tpu.memory_space<vmem>>, vector<8x1xf32>
      %cst_34 = arith.constant 3.125000e-02 : f32
      %49 = vector.broadcast %cst_34 : f32 to vector<8x1xf32>
      %50 = arith.mulf %48, %49 : vector<8x1xf32>
      %51 = arith.subf %45, %50 : vector<8x1xf32>
      %cst_35 = arith.constant 0.899999976 : f32
      %52 = vector.broadcast %cst_35 : f32 to vector<8x1xf32>
      %53 = arith.mulf %52, %47 : vector<8x1xf32>
      %cst_36 = arith.constant 1.000000e-01 : f32
      %54 = vector.broadcast %cst_36 : f32 to vector<8x1xf32>
      %55 = arith.mulf %54, %51 : vector<8x1xf32>
      %56 = arith.addf %53, %55 : vector<8x1xf32>
      %c8_i32 = arith.constant 8 : i32
      %57 = arith.muli %arg0, %c8_i32 : i32
      %58 = tpu.iota {dimensions = array<i32: 0>} : vector<8x1xi32>
      %59 = vector.broadcast %57 : i32 to vector<8x1xi32>
      %60 = arith.addi %59, %58 : vector<8x1xi32>
      %c0_i32_37 = arith.constant 0 : i32
      %61 = vector.broadcast %c0_i32_37 : i32 to vector<8x1xi32>
      %62 = arith.cmpi eq, %4, %61 : vector<8x1xi32>
      %c16_i32 = arith.constant 16 : i32
      %63 = vector.broadcast %c16_i32 : i32 to vector<8x1xi32>
      %64 = arith.cmpi sge, %60, %63 : vector<8x1xi32>
      %65 = arith.ori %62, %64 : vector<8x1xi1>
      %cst_38 = arith.constant 0.000000e+00 : f32
      %66 = vector.broadcast %cst_38 : f32 to vector<8x1xf32>
      %67 = arith.select %65, %66, %56 : vector<8x1xi1>, vector<8x1xf32>
      %c0_39 = arith.constant 0 : index
      %c0_40 = arith.constant 0 : index
      %68 = vector.load %arg4[%c0_39, %c0_40] : memref<8x1xf32, #tpu.memory_space<vmem>>, vector<8x1xf32>
      tpu.vector_store %arg4[%c0_39, %c0_40], %67 {strides = array<i32>} : memref<8x1xf32, #tpu.memory_space<vmem>>, vector<8x1xf32>,
    } else {
    }
    return
  }
  func.func @transform_0(%arg0: i32, %arg1: i32) -> (i32, i32) {
    %c0_i32 = arith.constant 0 : i32
    %c0_i32_0 = arith.constant 0 : i32
    return %arg0, %c0_i32 : i32, i32
  }
  func.func @transform_1(%arg0: i32, %arg1: i32) -> (i32, i32) {
    %c0_i32 = arith.constant 0 : i32
    return %arg0, %arg1 : i32, i32
  }
  func.func @transform_2(%arg0: i32, %arg1: i32) -> (i32, i32) {
    %c0_i32 = arith.constant 0 : i32
    %c0_i32_0 = arith.constant 0 : i32
    return %arg0, %c0_i32 : i32, i32
  }
}

</mosaic_0001>

<llo_original>
// kernel: tpu_custom_call.1
$region0: #{tpu_custom_call.1}
  #allocation0 [shape = 'u32[]', space=smem, size = 0x4, offset = 0x4, fixed_abs, tag = 'smem constant byte address 0x4 - core index']
  #allocation1 [shape = 'u32[144,128]{1,0:T(1,128)}', space=vmem, size = 0x12000, scoped, tag = 'internal scratch']
  #allocation2 [shape = 'f32[8,1]{1,0:T(8,128)}', space=vmem, size = 0x1000, scoped, tag = 'scratch operand']
  #allocation3 [shape = 'f32[8,1]{1,0:T(8,128)}', space=vmem, size = 0x1000, scoped, tag = 'scratch operand']
  #allocation4 [shape = 'f32[8,1]{1,0:T(8,128)}', space=vmem, size = 0x1000, scoped, tag = 'scratch operand']
  #allocation5 [shape = 'f32[8,1]{1,0:T(8,128)}', space=vmem, size = 0x1000, scoped, tag = 'scratch operand']
  %s0 = inlined_call_operand.vmem [shape: s32[16,1], index: 0, kind: input, shape index: {}]
  %s1 = inlined_call_operand.vmem [shape: f32[16,32], index: 1, kind: input, shape index: {}]
  %s2 = inlined_call_operand.vmem [shape: f32[16,1], index: 2, kind: output, shape index: {}]
  %s3 = sld [smem:[#allocation0]]
  $region49: #{tpu_custom_call.1} parent=0
    _
  %s5 = ssub.s32 1, %s3
  %s6 = scalar_select 0, %s5, %s3
  loop: start=0, step=1, limit=4
  $region2: #{tpu_custom_call.1} parent=0 // loop_pre_header
    _
  $region3: #{tpu_custom_call.1} parent=0 // loop_header
    %s8 = sphi 0, %s12
    %p9 = scmp.ge.s32.totalorder %s8, 4
    %s15 = sphi 0, %s27
    %s16 = sphi 0, %s23
    %s17 = sphi 0, %s15
    %s18 = sphi 0, %s16
    %s19 = sphi 0, %s17
    %s20 = sphi 0, %s18
    %s30 = sphi 0, %s32
    %s33 = sphi 0, %s30
    %s34 = sphi 0, %s33
    %s50 = sphi 0, %s34
    %s58 = sphi 0, %s60
    %s61 = sphi 0, %s58
    %s62 = sphi 0, %s61
    %s78 = sphi 0, %s62
    %s84 = sphi 0, %s86
    %s87 = sphi 0, %s84
    %s88 = sphi 0, %s87
    %s104 = sphi 0, %s88
  $region4: #{tpu_custom_call.1} parent=0 // loop_header_branch
    %11 = sbr.rel (%p9) target = $region8
  $region5: #{tpu_custom_call.1} parent=0 // loop_body
    %s13 = ssub.s32 %s8, 1
    %s14 = ssub.s32 %s8, 2
    %s21 = sadd.s32 1, %s16
    %p22 = scmp.ge.s32.totalorder %s21, 1
    %s23 = scalar_select %p22, 0, %s21
    %s24 = sadd.s32 1, %s15
    %s25 = scalar_select %p22, %s24, %s15
    %p26 = scmp.ge.s32.totalorder %s25, 2
    %s27 = scalar_select %p26, 0, %s25
    %s28 = ssub.s32 %s15, %s27
    %p29 = scmp.eq.s32.totalorder %s28, 0
    %s31 = sadd.s32 %s30, 1
    %s32 = scalar_select %p29, %s30, %s31
    %p35 = pneg %p29
    %p36 = scmp.eq.s32.totalorder %s8, 1
    %p37 = por %p35, %p36
    %p38 = scmp.ne.s32.totalorder %s30, %s33
    %p39 = scmp.eq.s32.totalorder %s8, 0
    %p40 = por %p38, %p39
    %p41 = scmp.ne.s32.totalorder %s30, %s33
    %p42 = scmp.eq.s32.totalorder %s13, 1
    %p43 = por %p41, %p42
    %p44 = scmp.ne.s32.totalorder %s33, %s34
    %p45 = scmp.eq.s32.totalorder %s13, 0
    %p46 = por %p44, %p45
    %p47 = scmp.ne.s32.totalorder %s33, %s34
    %p48 = scmp.eq.s32.totalorder %s14, 1
    %p49 = por %p47, %p48
    %p51 = scmp.ne.s32.totalorder %s34, %s50
    %p52 = scmp.eq.s32.totalorder %s14, 0
    %p53 = por %p51, %p52
    %s54 = ssub.s32 %s15, %s27
    %s55 = ssub.s32 %s16, %s23
    %s56 = sor.u32 %s54, %s55
    %p57 = scmp.eq.s32.totalorder %s56, 0
    %s59 = sadd.s32 %s58, 1
    %s60 = scalar_select %p57, %s58, %s59
    %p63 = pneg %p57
    %p64 = scmp.eq.s32.totalorder %s8, 1
    %p65 = por %p63, %p64
    %p66 = scmp.ne.s32.totalorder %s58, %s61
    %p67 = scmp.eq.s32.totalorder %s8, 0
    %p68 = por %p66, %p67
    %p69 = scmp.ne.s32.totalorder %s58, %s61
    %p70 = scmp.eq.s32.totalorder %s13, 1
    %p71 = por %p69, %p70
    %p72 = scmp.ne.s32.totalorder %s61, %s62
    %p73 = scmp.eq.s32.totalorder %s13, 0
    %p74 = por %p72, %p73
    %p75 = scmp.ne.s32.totalorder %s61, %s62
    %p76 = scmp.eq.s32.totalorder %s14, 1
    %p77 = por %p75, %p76
    %p79 = scmp.ne.s32.totalorder %s62, %s78
    %p80 = scmp.eq.s32.totalorder %s14, 0
    %p81 = por %p79, %p80
    %s82 = ssub.s32 %s15, %s27
    %p83 = scmp.eq.s32.totalorder %s82, 0
    %s85 = sadd.s32 %s84, 1
    %s86 = scalar_select %p83, %s84, %s85
    %p89 = pneg %p83
    %p90 = scmp.eq.s32.totalorder %s8, 1
    %p91 = por %p89, %p90
    %p92 = scmp.ne.s32.totalorder %s84, %s87
    %p93 = scmp.eq.s32.totalorder %s8, 0
    %p94 = por %p92, %p93
    %p95 = scmp.ne.s32.totalorder %s84, %s87
    %p96 = scmp.eq.s32.totalorder %s13, 1
    %p97 = por %p95, %p96
    %p98 = scmp.ne.s32.totalorder %s87, %s88
    %p99 = scmp.eq.s32.totalorder %s13, 0
    %p100 = por %p98, %p99
    %p101 = scmp.ne.s32.totalorder %s87, %s88
    %p102 = scmp.eq.s32.totalorder %s14, 1
    %p103 = por %p101, %p102
    %p105 = scmp.ne.s32.totalorder %s88, %s104
    %p106 = scmp.eq.s32.totalorder %s14, 0
    %p107 = por %p105, %p106
    %p108 = scmp.le.s32.totalorder 1, %s8
    %p109 = scmp.lt.s32.totalorder %s8, 3
    %p110 = pnand %p108, %p109
    %p111 = pneg %p110
    // Predicated region
    $region9: #{tpu_custom_call.1} parent=5 // pred_check
      _
    $region10: #{tpu_custom_call.1} parent=5 // pred_check_branch
      %113 = sbr.rel (%p110) target = $region12
    $region11: #{tpu_custom_call.1} parent=5 // pred_region
      %s114 = ssub.s32 %s8, 1
    $region12: #{tpu_custom_call.1} parent=5 // pred_fallthru
      _
    %p115 = scmp.lt.s32.totalorder %s8, 2
    // Predicated region
    $region13: #{tpu_custom_call.1} parent=5 // pred_check
      %p116 = pneg %p115
    $region14: #{tpu_custom_call.1} parent=5 // pred_check_branch
      %118 = sbr.rel (%p116) target = $region16
    $region15: #{tpu_custom_call.1} parent=5 // pred_region
      // Predicated region
      $region17: #{tpu_custom_call.1} parent=15 // pred_check
        %p119 = pneg %p40
      $region18: #{tpu_custom_call.1} parent=15 // pred_check_branch
        %121 = sbr.rel (%p119) target = $region20
      $region19: #{tpu_custom_call.1} parent=15 // pred_region
        %p122 = scmp.lt.s32.totalorder %s15, 1
        %s123 = scalar_select %p122, %s15, 1
        %s124 = smul.addr %s123, 8
        %s125 = scalar_lea.vmem %s0, %s124
      $region20: #{tpu_custom_call.1} parent=15 // pred_fallthru
        _
      // Predicated region
      $region21: #{tpu_custom_call.1} parent=15 // pred_check
        %p126 = pneg %p68
      $region22: #{tpu_custom_call.1} parent=15 // pred_check_branch
        %128 = sbr.rel (%p126) target = $region24
      $region23: #{tpu_custom_call.1} parent=15 // pred_region
        %p129 = scmp.lt.s32.totalorder %s15, 1
        %s130 = scalar_select %p129, %s15, 1
        %p131 = scmp.lt.s32.totalorder %s16, 0
        %s132 = scalar_select %p131, %s16, 0
        %s133 = sadd.s32 %s132, %s130
        %s134 = smul.addr %s133, 8
        %s135 = scalar_lea.vmem %s1, %s134
      $region24: #{tpu_custom_call.1} parent=15 // pred_fallthru
        _
    $region16: #{tpu_custom_call.1} parent=5 // pred_fallthru
      _
    %p136 = scmp.le.s32.totalorder 1, %s8
    %p137 = scmp.lt.s32.totalorder %s8, 3
    %p138 = pnand %p136, %p137
    %p139 = pneg %p138
    // Predicated region
    $region25: #{tpu_custom_call.1} parent=5 // pred_check
      _
    $region26: #{tpu_custom_call.1} parent=5 // pred_check_branch
      %141 = sbr.rel (%p138) target = $region28
    $region27: #{tpu_custom_call.1} parent=5 // pred_region
      %s142 = ssub.s32 %s8, 1
      %p143 = scmp.lt.s32.totalorder %s17, 1
      %s144 = scalar_select %p143, %s17, 1
      %s145 = smul.addr %s144, 8
      %s146 = scalar_lea.vmem %s0, %s145
      %p147 = pneg %p46
      %p148 = pneg %p43
      %p149 = scmp.lt.s32.totalorder %s17, 1
      %s150 = scalar_select %p149, %s17, 1
      %p151 = scmp.lt.s32.totalorder %s18, 0
      %s152 = scalar_select %p151, %s18, 0
      %s153 = sadd.s32 %s152, %s150
      %s154 = smul.addr %s153, 8
      %s155 = scalar_lea.vmem %s1, %s154
      %p156 = pneg %p74
      %p157 = pneg %p71
      %p158 = pneg %p100
      %p159 = pneg %p97
      %p160 = scmp.lt.s32.totalorder %s17, 1
      %s161 = scalar_select %p160, %s17, 1
      %s162 = smul.addr %s161, 8
      %s163 = scalar_lea.vmem %s2, %s162
      %p164 = scmp.lt.s32.totalorder %s17, 1
      %s165 = scalar_select %p164, %s17, 1
      %s166 = smul.addr %s165, 8
      %s167 = scalar_lea.vmem %s0, %s166
      %p168 = scmp.lt.s32.totalorder %s17, 1
      %s169 = scalar_select %p168, %s17, 1
      %p170 = scmp.lt.s32.totalorder %s18, 0
      %s171 = scalar_select %p170, %s18, 0
      %s172 = sadd.s32 %s171, %s169
      %s173 = smul.addr %s172, 8
      %s174 = scalar_lea.vmem %s1, %s173
      %p175 = scmp.lt.s32.totalorder %s17, 1
      %s176 = scalar_select %p175, %s17, 1
      %s177 = smul.addr %s176, 8
      %s178 = scalar_lea.vmem %s2, %s177
      %p179 = scmp.eq.s32.totalorder %s18, 0
      // Predicated region
      $region29: #{tpu_custom_call.1} parent=27 // pred_check
        %p180 = pneg %p179
      $region30: #{tpu_custom_call.1} parent=27 // pred_check_branch
        %182 = sbr.rel (%p180) target = $region32
      $region31: #{tpu_custom_call.1} parent=27 // pred_region
        %vm183 = vcmask 7168
        %184 = vst.msk [vmem:[#allocation2] sm:$0xff] %vm183, -inf
        %185 = vst.msk [vmem:[#allocation3] sm:$0xff] %vm183, 0.0
        %186 = vst.msk [vmem:[#allocation4] sm:$0xff] %vm183, 0.0
        %187 = vst.msk [vmem:[#allocation5] sm:$0xff] %vm183, 0.0
      $region32: #{tpu_custom_call.1} parent=27 // pred_fallthru
        _
      %v188 = vld [vmem:[%s174] sm:$0xff]
      %v189 = vld [vmem:[%s167] sm:$0xff]
      %s190 = smul.u32 %s18, 32
      %v191 = vlaneseq
      %v192 = vand.u32 %v191, 127
      %v193 = vstv %s190
      %v194 = vadd.s32 %v193, %v192
      %195 = vset.pattern.permute.xlu0 0
      %196 = vperm.xlu0 %195, %v189
      %v197 = vpop.permute.xlu0 %196
      %vm198 = vcmp.eq.s32.totalorder %v194, %v197
      %vm199 = vcmask 261120
      %v200 = vsel %vm199, %v188, -inf
      %201 = vmax.xlane.f32.xlu0 %v200
      %v202 = vpop.xlane.xlu0 %201
      %v203 = vld [vmem:[#allocation2] sm:$0xff]
      %v204 = vmax.f32 %v203, %v202
      %v205 = vsub.f32 %v203, %v204
      %v206 = vmul.f32 %v205, 1.442695
      %v207 = vpow.pop %v206
      %209 = vset.pattern.permute.xlu0 0
      %210 = vperm.xlu0 %209, %v204
      %v211 = vpop.permute.xlu0 %210
      %v213 = vsub.f32 %v188, %v211
      %v214 = vmul.f32 %v213, 1.442695
      %v215 = vpow.pop %v214
      %v216 = vld [vmem:[#allocation3] sm:$0xff]
      %v217 = vmul.f32 %v207, %v216
      %v218 = vsel %vm199, %v215, 0.0
      %219 = vadd.xlane.f32.xlu0 %v218
      %v220 = vpop.xlane.xlu0 %219
      %v221 = vadd.f32 %v217, %v220
      %vm222 = vcmask 7168
      %223 = vst.msk [vmem:[#allocation3] sm:$0xff] %vm222, %v221
      %v224 = vld [vmem:[#allocation4] sm:$0xff]
      %v225 = vsel %vm199, %v188, 0.0
      %226 = vadd.xlane.f32.xlu0 %v225
      %v227 = vpop.xlane.xlu0 %226
      %v228 = vadd.f32 %v224, %v227
      %229 = vst.msk [vmem:[#allocation4] sm:$0xff] %vm222, %v228
      %v230 = vld [vmem:[#allocation5] sm:$0xff]
      %v231 = vsel %vm198, %v188, 0.0
      %v232 = vsel %vm199, %v231, 0.0
      %233 = vadd.xlane.f32.xlu0 %v232
      %v234 = vpop.xlane.xlu0 %233
      %v235 = vadd.f32 %v230, %v234
      %236 = vst.msk [vmem:[#allocation5] sm:$0xff] %vm222, %v235
      %237 = vst.msk [vmem:[#allocation2] sm:$0xff] %vm222, %v204
      // Predicated region
      $region33: #{tpu_custom_call.1} parent=27 // pred_check
        %p238 = pneg %p179
      $region34: #{tpu_custom_call.1} parent=27 // pred_check_branch
        %240 = sbr.rel (%p238) target = $region36
      $region35: #{tpu_custom_call.1} parent=27 // pred_region
        %v241 = vld [vmem:[#allocation3] sm:$0xff]
        %v242 = vlog2.pop %v241
        %v243 = vmul.f32 %v242, 0.6931472
        %v244 = vld [vmem:[#allocation2] sm:$0xff]
        %v245 = vadd.f32 %v243, %v244
        %v246 = vld [vmem:[#allocation5] sm:$0xff]
        %v247 = vsub.f32 %v245, %v246
        %v248 = vld [vmem:[#allocation4] sm:$0xff]
        %v249 = vmul.f32 %v248, 0.03125
        %v250 = vsub.f32 %v245, %v249
        %v251 = vmul.f32 %v247, 0.9
        %v252 = vmul.f32 %v250, 0.1
        %v253 = vadd.f32 %v251, %v252
        %s254 = smul.u32 %s17, 8
        %v255 = vlaneseq
        %v256 = vshrl.u32 %v255, 7
        %v257 = vstv %s254
        %v258 = vadd.s32 %v257, %v256
        %vm259 = vcmp.eq.s32.totalorder %v189, 0
        %vm260 = vcmp.ge.s32.totalorder %v258, 16
        %vm261 = vmor %vm259, %vm260
        %v262 = vsel %vm261, 0.0, %v253
        %263 = vst.msk [vmem:[%s178] sm:$0xff] %vm222, %v262
      $region36: #{tpu_custom_call.1} parent=27 // pred_fallthru
        _
      %p264 = scmp.lt.s32.totalorder %s17, 1
      %s265 = scalar_select %p264, %s17, 1
      %s266 = smul.addr %s265, 8
      %s267 = scalar_lea.vmem %s2, %s266
      // Predicated region
      $region37: #{tpu_custom_call.1} parent=27 // pred_check
        %p268 = pneg %p97
      $region38: #{tpu_custom_call.1} parent=27 // pred_check_branch
        %270 = sbr.rel (%p268) target = $region40
      $region39: #{tpu_custom_call.1} parent=27 // pred_region
        _
      $region40: #{tpu_custom_call.1} parent=27 // pred_fallthru
        _
    $region28: #{tpu_custom_call.1} parent=5 // pred_fallthru
      _
    %p271 = scmp.le.s32.totalorder 2, %s8
    // Predicated region
    $region41: #{tpu_custom_call.1} parent=5 // pred_check
      %p272 = pneg %p271
    $region42: #{tpu_custom_call.1} parent=5 // pred_check_branch
      %274 = sbr.rel (%p272) target = $region44
    $region43: #{tpu_custom_call.1} parent=5 // pred_region
      %s275 = ssub.s32 %s8, 2
      // Predicated region
      $region45: #{tpu_custom_call.1} parent=43 // pred_check
        %p276 = pneg %p103
      $region46: #{tpu_custom_call.1} parent=43 // pred_check_branch
        %278 = sbr.rel (%p276) target = $region48
      $region47: #{tpu_custom_call.1} parent=43 // pred_region
        %p279 = scmp.lt.s32.totalorder %s19, 1
        %s280 = scalar_select %p279, %s19, 1
        %s281 = smul.addr %s280, 8
        %s282 = scalar_lea.vmem %s2, %s281
      $region48: #{tpu_custom_call.1} parent=43 // pred_fallthru
        _
    $region44: #{tpu_custom_call.1} parent=5 // pred_fallthru
      _
  $region6: #{tpu_custom_call.1} parent=0 // loop_footer
    %s12 = sadd.s32 1, %s8
  $region7: #{tpu_custom_call.1} parent=0 // loop_footer_branch
    %7 = sbr.rel target = $region3
  $region8: #{tpu_custom_call.1} parent=0 // loop_exit
    _

</llo_original>
